<compile_context>
chip_gen: v5e
topology: v5e:2x2
jax: 0.10.0
libtpu: 0.0.40
codegen_flags: <defaults>
</compile_context>

<pallas_src>
import functools

import jax
import jax.numpy as jnp
import numpy as np
from jax.experimental import pallas as pl
from jax.experimental.pallas import tpu as pltpu


# ----------------------------- config (cfg_obj) -----------------------------
X_DIM = 2
Y_DIM_ONEHOT = 3
Y_DIM_OUT = 3
R_DIM = 32
Z_DIM = 16
ENC_HIDDEN_DIM = 32
DEC_HIDDEN_DIM = 32

B = 2        # batch
N_CTX = 8    # context points
N_TGT = 8    # target points

XY_PAD = 8   # padded encoder input width  (X_DIM + Y_DIM_ONEHOT = 5 -> 8)
XT_PAD = 8   # padded decoder x_target width (X_DIM = 2 -> 8)
DATA_COLS = 32  # data slab: cols 0:8 = x_ctx‖y_onehot, 8:16 = x_tgt, 16:32 = eps

# --------------------- packed weight slab layout (single source) ---------------------
# name -> (row_off, col_off, n_rows, n_cols)   lane-dense (64, 128) slab, 4 banks of 32
SLAB_ROWS, SLAB_COLS = 64, 128
SLAB_SEG = {
    # bank 0 (cols 0:32)
    "ew2":   (0,  0,  ENC_HIDDEN_DIM, ENC_HIDDEN_DIM),
    "wfuse": (32, 0,  ENC_HIDDEN_DIM, 2 * Z_DIM),      # enc_w3 @ [lat_wm | lat_wl]
    # bank 1 (cols 32:64)
    "dw2":   (0,  32, DEC_HIDDEN_DIM, DEC_HIDDEN_DIM),
    "dw3":   (32, 32, DEC_HIDDEN_DIM, 32),             # cols 0:Y_DIM_OUT live, rest 0
    # bank 2 (cols 64:96)
    "dw1z":  (0,  64, Z_DIM, DEC_HIDDEN_DIM),
    "sel":   (16, 64, B * N_TGT, B),                    # z -> target broadcast selector
    "ew1":   (32, 64, XY_PAD, ENC_HIDDEN_DIM),          # rows 0:5 live, rest 0
    "dw1x":  (40, 64, XT_PAD, DEC_HIDDEN_DIM),          # rows 0:2 live, rest 0
    "avg":   (48, 64, B, B * N_CTX),                    # per-batch context mean matrix
    "eb1":   (56, 64, 1, ENC_HIDDEN_DIM),
    # bank 3 (cols 96:128)
    "eb2":   (0,  96, 1, ENC_HIDDEN_DIM),
    "bfuse": (8,  96, 1, 2 * Z_DIM),                    # enc_b3 @ lat_w + lat_b
    "db1":   (16, 96, 1, DEC_HIDDEN_DIM),
    "db2":   (24, 96, 1, DEC_HIDDEN_DIM),
    "db3":   (32, 96, 1, 32),                           # cols 0:Y_DIM_OUT live, rest 0
}


# ------------------------------ fused Pallas kernel --------------------------
def _ogpnp_fused_kernel(d_ref, w_ref, o_ref, *, n_ctx_rows, n_tgt_rows, bsz, z_dim):
    """d:(rows, 32) data slab, w:(64, 128) weight slab,
       o:(n_tgt_rows + bsz, 32) = [y_full (all 32 cols) ; zml (mean‖logvar)]."""
    f32 = jnp.float32

    def W(name):
        r, c, nr, nc = SLAB_SEG[name]
        return w_ref[r:r + nr, c:c + nc]          # static slice -> cheap view

    # ---- NPEncoder (whole batch, zero-padded fused first layer) ----
    xyc = d_ref[0:n_ctx_rows, 0:XY_PAD]            # (B*Nc, 8), cols 5:8 are zero
    h = jnp.maximum(
        jnp.dot(xyc, W("ew1"), preferred_element_type=f32) + W("eb1"), 0.0)
    h = jnp.maximum(
        jnp.dot(h, W("ew2"), preferred_element_type=f32) + W("eb2"), 0.0)

    # ---- aggregate + fused (enc_w3 -> latent head) linear chain ----
    agg_h = jnp.dot(W("avg"), h, preferred_element_type=f32)                  # (B, H)
    zml = jnp.dot(agg_h, W("wfuse"), preferred_element_type=f32) + W("bfuse")  # (B, 2Z)

    # ---- reparameterize ----
    eps = d_ref[0:bsz, 16:16 + z_dim]              # (B, Z)
    z_mean = zml[:, 0:z_dim]
    z_logvar = zml[:, z_dim:2 * z_dim]
    z_sample = z_mean + eps * jnp.exp(0.5 * z_logvar)                          # (B, Z)

    # ---- NPDecoder (split W1; z broadcast over targets via packed selector) ----
    z_h = jnp.dot(z_sample, W("dw1z"), preferred_element_type=f32)             # (B, H)
    z_rep = jnp.dot(W("sel"), z_h, preferred_element_type=f32)                 # (B*Nt, H)
    xt = d_ref[0:n_tgt_rows, 8:8 + XT_PAD]          # (B*Nt, 8), cols 2:8 are zero
    xt_h = jnp.dot(xt, W("dw1x"), preferred_element_type=f32)                  # (B*Nt, H)

    hd = jnp.maximum(z_rep + xt_h + W("db1"), 0.0)
    hd = jnp.maximum(
        jnp.dot(hd, W("dw2"), preferred_element_type=f32) + W("db2"), 0.0)
    y_full = jnp.dot(hd, W("dw3"), preferred_element_type=f32) + W("db3")      # (B*Nt, 32)

    # ---- single lane-dense output slab ----
    o_ref[0:n_tgt_rows, :] = y_full
    o_ref[n_tgt_rows:n_tgt_rows + bsz, :] = zml


# -------------------------------- host wrapper --------------------------------
def ogpnp_forward(x_context, y_context_onehot, x_target, eps, w_slab):
    """Matches OGPNP.forward (single decoder head). Returns (y_pred, z_mean, z_logvar)."""
    b, nc, _ = x_context.shape
    nt = x_target.shape[1]
    z = eps.shape[-1]
    n_ctx_rows, n_tgt_rows = b * nc, b * nt

    rows = -(-max(n_ctx_rows, n_tgt_rows, b) // 8) * 8
    d = jnp.zeros((rows, DATA_COLS), jnp.float32)
    d = d.at[:n_ctx_rows, 0:X_DIM].set(x_context.reshape(n_ctx_rows, X_DIM))
    d = d.at[:n_ctx_rows, X_DIM:X_DIM + Y_DIM_ONEHOT].set(
        y_context_onehot.reshape(n_ctx_rows, Y_DIM_ONEHOT))
    d = d.at[:n_tgt_rows, 8:8 + X_DIM].set(x_target.reshape(n_tgt_rows, X_DIM))
    d = d.at[:b, 16:16 + z].set(eps.reshape(b, z))

    kernel = functools.partial(
        _ogpnp_fused_kernel,
        n_ctx_rows=n_ctx_rows, n_tgt_rows=n_tgt_rows, bsz=b, z_dim=z)

    out = pl.pallas_call(
        kernel,
        out_shape=jax.ShapeDtypeStruct((n_tgt_rows + b, DATA_COLS), jnp.float32),
        in_specs=[pl.BlockSpec(memory_space=pltpu.MemorySpace.VMEM),
                  pl.BlockSpec(memory_space=pltpu.MemorySpace.VMEM)],
        out_specs=pl.BlockSpec(memory_space=pltpu.MemorySpace.VMEM),
        cost_estimate=pl.CostEstimate(
            flops=125_000, transcendentals=b * z, bytes_accessed=38_000),
    )(d, w_slab)

    y_pred = out[:n_tgt_rows, :Y_DIM_OUT].reshape(b, nt, Y_DIM_OUT)
    zml = out[n_tgt_rows:n_tgt_rows + b, :]
    return y_pred, zml[:, :z], zml[:, z:2 * z]


# -------------------------- deterministic parameters --------------------------
def init_params(key):
    def linear(key, fan_in, fan_out):
        kw, kb = jax.random.split(key)
        bound = 1.0 / np.sqrt(fan_in)
        w = jax.random.uniform(kw, (fan_in, fan_out), jnp.float32, -bound, bound)
        b = jax.random.uniform(kb, (1, fan_out), jnp.float32, -bound, bound)
        return w, b

    keys = jax.random.split(key, 8)
    p = {}
    p["enc_w1"], p["enc_b1"] = linear(keys[0], X_DIM + Y_DIM_ONEHOT, ENC_HIDDEN_DIM)
    p["enc_w2"], p["enc_b2"] = linear(keys[1], ENC_HIDDEN_DIM, ENC_HIDDEN_DIM)
    p["enc_w3"], p["enc_b3"] = linear(keys[2], ENC_HIDDEN_DIM, R_DIM)
    p["lat_wm"], p["lat_bm"] = linear(keys[3], R_DIM, Z_DIM)
    p["lat_wl"], p["lat_bl"] = linear(keys[4], R_DIM, Z_DIM)
    p["dec_w1"], p["dec_b1"] = linear(keys[5], Z_DIM + X_DIM, DEC_HIDDEN_DIM)
    p["dec_w2"], p["dec_b2"] = linear(keys[6], DEC_HIDDEN_DIM, DEC_HIDDEN_DIM)
    p["dec_w3"], p["dec_b3"] = linear(keys[7], DEC_HIDDEN_DIM, Y_DIM_OUT)
    return p


def pack_params(p):
    """Pack all weights, the fused enc_w3->latent head, and the constant
    mean/broadcast matrices into one lane-dense (64, 128) f32 slab (done once)."""
    slab = np.zeros((SLAB_ROWS, SLAB_COLS), np.float32)

    def put(name, arr):
        a = np.asarray(arr, np.float32)
        r, c, _, _ = SLAB_SEG[name]
        slab[r:r + a.shape[0], c:c + a.shape[1]] = a

    put("ew1", p["enc_w1"]); put("eb1", p["enc_b1"])
    put("ew2", p["enc_w2"]); put("eb2", p["enc_b2"])

    # fuse the purely-linear chain  r_i -> mean -> latent head  at pack time
    w_lat = np.concatenate([np.asarray(p["lat_wm"]), np.asarray(p["lat_wl"])], axis=1)
    b_lat = np.concatenate([np.asarray(p["lat_bm"]), np.asarray(p["lat_bl"])], axis=1)
    put("wfuse", np.asarray(p["enc_w3"], np.float32) @ w_lat)
    put("bfuse", np.asarray(p["enc_b3"], np.float32) @ w_lat + b_lat)

    put("dw1z", p["dec_w1"][:Z_DIM]); put("dw1x", p["dec_w1"][Z_DIM:]); put("db1", p["dec_b1"])
    put("dw2", p["dec_w2"]); put("db2", p["dec_b2"])
    put("dw3", p["dec_w3"]); put("db3", p["dec_b3"])

    # constant per-batch context-mean and z-broadcast selector matrices
    avg = np.zeros((B, B * N_CTX), np.float32)
    sel = np.zeros((B * N_TGT, B), np.float32)
    for b in range(B):
        avg[b, b * N_CTX:(b + 1) * N_CTX] = 1.0 / N_CTX
        sel[b * N_TGT:(b + 1) * N_TGT, b] = 1.0
    put("avg", avg); put("sel", sel)
    return jnp.asarray(slab)


# --------------------------------- pure-JAX ref --------------------------------
def ogpnp_forward_ref(x_context, y_context_onehot, x_target, p, eps):
    xy = jnp.concatenate([x_context, y_context_onehot], axis=-1)
    h = jax.nn.relu(xy @ p["enc_w1"] + p["enc_b1"])
    h = jax.nn.relu(h @ p["enc_w2"] + p["enc_b2"])
    r_i = h @ p["enc_w3"] + p["enc_b3"]
    r_agg = jnp.mean(r_i, axis=1)                                       # (B, R)
    z_mean = r_agg @ p["lat_wm"] + p["lat_bm"]
    z_logvar = r_agg @ p["lat_wl"] + p["lat_bl"]
    z_sample = z_mean + eps * jnp.exp(0.5 * z_logvar)
    nt = x_target.shape[1]
    z_rep = jnp.broadcast_to(z_sample[:, None, :], (z_sample.shape[0], nt, Z_DIM))
    zx = jnp.concatenate([z_rep, x_target], axis=-1)
    h = jax.nn.relu(zx @ p["dec_w1"] + p["dec_b1"])
    h = jax.nn.relu(h @ p["dec_w2"] + p["dec_b2"])
    y = h @ p["dec_w3"] + p["dec_b3"]
    return y, z_mean, z_logvar


# ------------------------------------- main -------------------------------------
if __name__ == "__main__":
    # TODO(synk): head management / prototype symmetric-KL bookkeeping
    # (decide_head_for_task etc.) is host-side Python control flow outside
    # forward() and is not a kernel.
    key = jax.random.PRNGKey(0)
    k_par, k_xc, k_yc, k_xt, k_eps = jax.random.split(key, 5)

    params = init_params(k_par)
    w_slab = pack_params(params)   # packed once; reused every call

    x_context = jax.random.normal(k_xc, (B, N_CTX, X_DIM), jnp.float32)
    y_idx = jax.random.randint(k_yc, (B, N_CTX), 0, Y_DIM_ONEHOT)
    y_context_onehot = jax.nn.one_hot(y_idx, Y_DIM_ONEHOT, dtype=jnp.float32)
    x_target = jax.random.normal(k_xt, (B, N_TGT, X_DIM), jnp.float32)
    # reparameterization noise (eps ~ N(0,1)), generated host-side for determinism
    eps = jax.random.normal(k_eps, (B, Z_DIM), jnp.float32)

    fwd = jax.jit(ogpnp_forward)
    y_pred, z_mean, z_logvar = fwd(x_context, y_context_onehot, x_target, eps, w_slab)
    jax.block_until_ready((y_pred, z_mean, z_logvar))

    y_ref, zm_ref, zlv_ref = ogpnp_forward_ref(
        x_context, y_context_onehot, x_target, params, eps)
    np.testing.assert_allclose(np.asarray(y_pred), np.asarray(y_ref), rtol=2e-3, atol=2e-3)
    np.testing.assert_allclose(np.asarray(z_mean), np.asarray(zm_ref), rtol=2e-3, atol=2e-3)
    np.testing.assert_allclose(np.asarray(z_logvar), np.asarray(zlv_ref), rtol=2e-3, atol=2e-3)

    assert y_pred.shape == (B, N_TGT, Y_DIM_OUT)
    assert z_mean.shape == (B, Z_DIM) and z_logvar.shape == (B, Z_DIM)
    print("KERNEL_OK")
</pallas_src>

<mosaic_0001>
module attributes {stable_mosaic.version = 11 : i64} {
  func.func @_ogpnp_fused_kernel(%arg0: memref<16x32xf32, #tpu.memory_space<vmem>>, %arg1: memref<64x128xf32, #tpu.memory_space<vmem>>, %arg2: memref<18x32xf32, #tpu.memory_space<vmem>>) attributes {dimension_semantics = [], scalar_prefetch = 0 : i64, scratch_operands = 0 : i64, tpu.core_type = #tpu.core_type<tc>} {
    %c0 = arith.constant 0 : index
    %c0_0 = arith.constant 0 : index
    %0 = vector.load %arg0[%c0, %c0_0] : memref<16x32xf32, #tpu.memory_space<vmem>>, vector<16x8xf32>
    %c32 = arith.constant 32 : index
    %c64 = arith.constant 64 : index
    %1 = vector.load %arg1[%c32, %c64] : memref<64x128xf32, #tpu.memory_space<vmem>>, vector<8x32xf32>
    %cst = arith.constant dense<0.000000e+00> : vector<16x32xf32>
    %2 = tpu.matmul %0, %1, %cst {dimension_numbers = #tpu.dot_dimension_numbers<[1], [0], [0], [1], [0, 0, 1, 1], [], []>} : vector<16x8xf32>, vector<8x32xf32>, vector<16x32xf32> -> vector<16x32xf32>
    %c56 = arith.constant 56 : index
    %c64_1 = arith.constant 64 : index
    %3 = vector.load %arg1[%c56, %c64_1] : memref<64x128xf32, #tpu.memory_space<vmem>>, vector<1x32xf32>
    %4 = vector.broadcast %3 : vector<1x32xf32> to vector<16x32xf32>
    %5 = arith.addf %2, %4 : vector<16x32xf32>
    %cst_2 = arith.constant 0.000000e+00 : f32
    %6 = vector.broadcast %cst_2 : f32 to vector<16x32xf32>
    %7 = arith.maximumf %5, %6 : vector<16x32xf32>
    %c0_3 = arith.constant 0 : index
    %c0_4 = arith.constant 0 : index
    %8 = vector.load %arg1[%c0_3, %c0_4] : memref<64x128xf32, #tpu.memory_space<vmem>>, vector<32x32xf32>
    %cst_5 = arith.constant dense<0.000000e+00> : vector<16x32xf32>
    %9 = tpu.matmul %7, %8, %cst_5 {dimension_numbers = #tpu.dot_dimension_numbers<[1], [0], [0], [1], [0, 0, 1, 1], [], []>} : vector<16x32xf32>, vector<32x32xf32>, vector<16x32xf32> -> vector<16x32xf32>
    %c0_6 = arith.constant 0 : index
    %c96 = arith.constant 96 : index
    %10 = vector.load %arg1[%c0_6, %c96] : memref<64x128xf32, #tpu.memory_space<vmem>>, vector<1x32xf32>
    %11 = vector.broadcast %10 : vector<1x32xf32> to vector<16x32xf32>
    %12 = arith.addf %9, %11 : vector<16x32xf32>
    %cst_7 = arith.constant 0.000000e+00 : f32
    %13 = vector.broadcast %cst_7 : f32 to vector<16x32xf32>
    %14 = arith.maximumf %12, %13 : vector<16x32xf32>
    %c48 = arith.constant 48 : index
    %c64_8 = arith.constant 64 : index
    %15 = vector.load %arg1[%c48, %c64_8] : memref<64x128xf32, #tpu.memory_space<vmem>>, vector<2x16xf32>
    %cst_9 = arith.constant dense<0.000000e+00> : vector<2x32xf32>
    %16 = tpu.matmul %15, %14, %cst_9 {dimension_numbers = #tpu.dot_dimension_numbers<[1], [0], [0], [1], [0, 0, 1, 1], [], []>} : vector<2x16xf32>, vector<16x32xf32>, vector<2x32xf32> -> vector<2x32xf32>
    %c32_10 = arith.constant 32 : index
    %c0_11 = arith.constant 0 : index
    %17 = vector.load %arg1[%c32_10, %c0_11] : memref<64x128xf32, #tpu.memory_space<vmem>>, vector<32x32xf32>
    %cst_12 = arith.constant dense<0.000000e+00> : vector<2x32xf32>
    %18 = tpu.matmul %16, %17, %cst_12 {dimension_numbers = #tpu.dot_dimension_numbers<[1], [0], [0], [1], [0, 0, 1, 1], [], []>} : vector<2x32xf32>, vector<32x32xf32>, vector<2x32xf32> -> vector<2x32xf32>
    %c8 = arith.constant 8 : index
    %c96_13 = arith.constant 96 : index
    %19 = vector.load %arg1[%c8, %c96_13] : memref<64x128xf32, #tpu.memory_space<vmem>>, vector<1x32xf32>
    %20 = vector.broadcast %19 : vector<1x32xf32> to vector<2x32xf32>
    %21 = arith.addf %18, %20 : vector<2x32xf32>
    %c0_14 = arith.constant 0 : index
    %c16 = arith.constant 16 : index
    %22 = vector.load %arg0[%c0_14, %c16] : memref<16x32xf32, #tpu.memory_space<vmem>>, vector<2x16xf32>
    %23 = vector.extract_strided_slice %21 {offsets = [0, 0], sizes = [2, 16], strides = [1, 1]} : vector<2x32xf32> to vector<2x16xf32>
    %24 = vector.extract_strided_slice %21 {offsets = [0, 16], sizes = [2, 16], strides = [1, 1]} : vector<2x32xf32> to vector<2x16xf32>
    %cst_15 = arith.constant 5.000000e-01 : f32
    %25 = vector.broadcast %cst_15 : f32 to vector<2x16xf32>
    %26 = arith.mulf %25, %24 : vector<2x16xf32>
    %27 = math.exp %26 : vector<2x16xf32>
    %28 = arith.mulf %22, %27 : vector<2x16xf32>
    %29 = arith.addf %23, %28 : vector<2x16xf32>
    %c0_16 = arith.constant 0 : index
    %c64_17 = arith.constant 64 : index
    %30 = vector.load %arg1[%c0_16, %c64_17] : memref<64x128xf32, #tpu.memory_space<vmem>>, vector<16x32xf32>
    %cst_18 = arith.constant dense<0.000000e+00> : vector<2x32xf32>
    %31 = tpu.matmul %29, %30, %cst_18 {dimension_numbers = #tpu.dot_dimension_numbers<[1], [0], [0], [1], [0, 0, 1, 1], [], []>} : vector<2x16xf32>, vector<16x32xf32>, vector<2x32xf32> -> vector<2x32xf32>
    %c16_19 = arith.constant 16 : index
    %c64_20 = arith.constant 64 : index
    %32 = vector.load %arg1[%c16_19, %c64_20] : memref<64x128xf32, #tpu.memory_space<vmem>>, vector<16x2xf32>
    %cst_21 = arith.constant dense<0.000000e+00> : vector<16x32xf32>
    %33 = tpu.matmul %32, %31, %cst_21 {dimension_numbers = #tpu.dot_dimension_numbers<[1], [0], [0], [1], [0, 0, 1, 1], [], []>} : vector<16x2xf32>, vector<2x32xf32>, vector<16x32xf32> -> vector<16x32xf32>
    %c0_22 = arith.constant 0 : index
    %c8_23 = arith.constant 8 : index
    %34 = vector.load %arg0[%c0_22, %c8_23] : memref<16x32xf32, #tpu.memory_space<vmem>>, vector<16x8xf32>
    %c40 = arith.constant 40 : index
    %c64_24 = arith.constant 64 : index
    %35 = vector.load %arg1[%c40, %c64_24] : memref<64x128xf32, #tpu.memory_space<vmem>>, vector<8x32xf32>
    %cst_25 = arith.constant dense<0.000000e+00> : vector<16x32xf32>
    %36 = tpu.matmul %34, %35, %cst_25 {dimension_numbers = #tpu.dot_dimension_numbers<[1], [0], [0], [1], [0, 0, 1, 1], [], []>} : vector<16x8xf32>, vector<8x32xf32>, vector<16x32xf32> -> vector<16x32xf32>
    %37 = arith.addf %33, %36 : vector<16x32xf32>
    %c16_26 = arith.constant 16 : index
    %c96_27 = arith.constant 96 : index
    %38 = vector.load %arg1[%c16_26, %c96_27] : memref<64x128xf32, #tpu.memory_space<vmem>>, vector<1x32xf32>
    %39 = vector.broadcast %38 : vector<1x32xf32> to vector<16x32xf32>
    %40 = arith.addf %37, %39 : vector<16x32xf32>
    %cst_28 = arith.constant 0.000000e+00 : f32
    %41 = vector.broadcast %cst_28 : f32 to vector<16x32xf32>
    %42 = arith.maximumf %40, %41 : vector<16x32xf32>
    %c0_29 = arith.constant 0 : index
    %c32_30 = arith.constant 32 : index
    %43 = vector.load %arg1[%c0_29, %c32_30] : memref<64x128xf32, #tpu.memory_space<vmem>>, vector<32x32xf32>
    %cst_31 = arith.constant dense<0.000000e+00> : vector<16x32xf32>
    %44 = tpu.matmul %42, %43, %cst_31 {dimension_numbers = #tpu.dot_dimension_numbers<[1], [0], [0], [1], [0, 0, 1, 1], [], []>} : vector<16x32xf32>, vector<32x32xf32>, vector<16x32xf32> -> vector<16x32xf32>
    %c24 = arith.constant 24 : index
    %c96_32 = arith.constant 96 : index
    %45 = vector.load %arg1[%c24, %c96_32] : memref<64x128xf32, #tpu.memory_space<vmem>>, vector<1x32xf32>
    %46 = vector.broadcast %45 : vector<1x32xf32> to vector<16x32xf32>
    %47 = arith.addf %44, %46 : vector<16x32xf32>
    %cst_33 = arith.constant 0.000000e+00 : f32
    %48 = vector.broadcast %cst_33 : f32 to vector<16x32xf32>
    %49 = arith.maximumf %47, %48 : vector<16x32xf32>
    %c32_34 = arith.constant 32 : index
    %c32_35 = arith.constant 32 : index
    %50 = vector.load %arg1[%c32_34, %c32_35] : memref<64x128xf32, #tpu.memory_space<vmem>>, vector<32x32xf32>
    %cst_36 = arith.constant dense<0.000000e+00> : vector<16x32xf32>
    %51 = tpu.matmul %49, %50, %cst_36 {dimension_numbers = #tpu.dot_dimension_numbers<[1], [0], [0], [1], [0, 0, 1, 1], [], []>} : vector<16x32xf32>, vector<32x32xf32>, vector<16x32xf32> -> vector<16x32xf32>
    %c32_37 = arith.constant 32 : index
    %c96_38 = arith.constant 96 : index
    %52 = vector.load %arg1[%c32_37, %c96_38] : memref<64x128xf32, #tpu.memory_space<vmem>>, vector<1x32xf32>
    %53 = vector.broadcast %52 : vector<1x32xf32> to vector<16x32xf32>
    %54 = arith.addf %51, %53 : vector<16x32xf32>
    %c0_39 = arith.constant 0 : index
    %c0_40 = arith.constant 0 : index
    %55 = vector.load %arg2[%c0_39, %c0_40] : memref<18x32xf32, #tpu.memory_space<vmem>>, vector<16x32xf32>
    tpu.vector_store %arg2[%c0_39, %c0_40], %54 {strides = array<i32>} : memref<18x32xf32, #tpu.memory_space<vmem>>, vector<16x32xf32>,
    %c16_41 = arith.constant 16 : index
    %c0_42 = arith.constant 0 : index
    %56 = vector.load %arg2[%c16_41, %c0_42] : memref<18x32xf32, #tpu.memory_space<vmem>>, vector<2x32xf32>
    tpu.vector_store %arg2[%c16_41, %c0_42], %21 {strides = array<i32>} : memref<18x32xf32, #tpu.memory_space<vmem>>, vector<2x32xf32>,
    return
  }
}

</mosaic_0001>

<llo_original>
// kernel: ogpnp_forward.1
$region0: #{ogpnp_forward.1}
  #allocation0 [shape = 'u32[]', space=smem, size = 0x4, offset = 0x4, fixed_abs, tag = 'smem constant byte address 0x4 - core index']
  #allocation1 [shape = 'u32[72,128]{1,0:T(1,128)}', space=vmem, size = 0x9000, scoped, tag = 'internal scratch']
  %s0 = inlined_call_operand.vmem [shape: f32[16,32], index: 0, kind: input, shape index: {}]
  %s1 = inlined_call_operand.vmem [shape: f32[64,128], index: 1, kind: input, shape index: {}]
  %s2 = inlined_call_operand.vmem [shape: f32[18,32], index: 2, kind: output, shape index: {}]
  %s3 = sld [smem:[#allocation0]]
  $region18: #{ogpnp_forward.1} parent=0
    _
  %s5 = ssub.s32 1, %s3
  %s6 = scalar_select 0, %s5, %s3
  // Predicated region
  $region2: #{ogpnp_forward.1} parent=0 // pred_check
    _
  $region3: #{ogpnp_forward.1} parent=0 // pred_check_branch
    %8 = sbr.rel (0) target = $region5
  $region4: #{ogpnp_forward.1} parent=0 // pred_region
    _
  $region5: #{ogpnp_forward.1} parent=0 // pred_fallthru
    _
  // Predicated region
  $region6: #{ogpnp_forward.1} parent=0 // pred_check
    _
  $region7: #{ogpnp_forward.1} parent=0 // pred_check_branch
    %10 = sbr.rel (0) target = $region9
  $region8: #{ogpnp_forward.1} parent=0 // pred_region
    _
  $region9: #{ogpnp_forward.1} parent=0 // pred_fallthru
    _
  %v11 = vld [vmem:[%s0] sm:$0xff]
  %v12 = vld [vmem:[%s0 + $0x8] sm:$0xff]
  %v13 = vld [vmem:[%s1 + $0x20] sm:$0xff]
  %v14 = vld [vmem:[%s1 + $0x38] sm:$0x1]
  %v15 = vperm.slane %v14, 0
  %17 = vrot.lane.b32.xlu0 %v13, 64
  %v18 = vpop.permute.xlu0 %17
  %21 = vrot.lane.b32.xlu0 %v15, 64
  %v22 = vpop.permute.xlu0 %21
  %vm24 = vcmask 64512
  %v26 = vsel %vm24, %v11, 0
  %v29 = vsel %vm24, %v12, 0
  %31 = vmatpush.msra.mxu0 0.0
  %32 = vmatpush.msra.mxu0 0.0
  %33 = vmatpush.msra.mxu0 0.0
  %34 = vmatpush.msra.mxu0 0.0
  %35 = vmatpush.msra.mxu0 0.0
  %36 = vmatpush.msra.mxu0 0.0
  %37 = vmatpush.msra.mxu0 0.0
  %38 = vmatpush.msra.mxu0 0.0
  %39 = vmatpush.msra.mxu0 0.0
  %40 = vmatpush.msra.mxu0 0.0
  %41 = vmatpush.msra.mxu0 0.0
  %42 = vmatpush.msra.mxu0 0.0
  %43 = vmatpush.msra.mxu0 0.0
  %44 = vmatpush.msra.mxu0 0.0
  %45 = vmatpush.msra.mxu0 0.0
  %46 = vmatpush.msra.mxu0 %v18
  %47 = vmatmul.f32.gmra.mxu0 %v26
  %v48 = vpop.f32.mrf.mxu0
  %v49 = vadd.f32 %v22, %v48
  %50 = vmatmul.f32.gmra.mxu0 %v29
  %v51 = vpop.f32.mrf.mxu0
  %v52 = vadd.f32 %v22, %v51
  %53 = vdwg.mxu0
  %v54 = vmax.f32 %v49, 0.0
  %v55 = vmax.f32 %v52, 0.0
  %v56 = vld [vmem:[%s1] sm:$0xff]
  %v57 = vld [vmem:[%s1 + $0x8] sm:$0xff]
  %v58 = vld [vmem:[%s1 + $0x10] sm:$0xff]
  %v59 = vld [vmem:[%s1 + $0x18] sm:$0xff]
  %v60 = vld [vmem:[%s1] sm:$0x1]
  %v61 = vperm.slane %v60, 0
  %63 = vrot.lane.b32.xlu0 %v61, 32
  %v64 = vpop.permute.xlu0 %63
  %vm66 = vcmask 261120
  %v68 = vsel %vm66, %v54, 0
  %v71 = vsel %vm66, %v55, 0
  %73 = vmatpush.msra.mxu0 0.0
  %74 = vmatpush.msra.mxu0 0.0
  %75 = vmatpush.msra.mxu0 0.0
  %76 = vmatpush.msra.mxu0 0.0
  %77 = vmatpush.msra.mxu0 0.0
  %78 = vmatpush.msra.mxu0 0.0
  %79 = vmatpush.msra.mxu0 0.0
  %80 = vmatpush.msra.mxu0 0.0
  %81 = vmatpush.msra.mxu0 0.0
  %82 = vmatpush.msra.mxu0 0.0
  %83 = vmatpush.msra.mxu0 0.0
  %84 = vmatpush.msra.mxu0 0.0
  %85 = vmatpush.msra.mxu0 %v59
  %86 = vmatpush.msra.mxu0 %v58
  %87 = vmatpush.msra.mxu0 %v57
  %88 = vmatpush.msra.mxu0 %v56
  %89 = vmatmul.f32.gmra.mxu0 %v68
  %v90 = vpop.f32.mrf.mxu0
  %v91 = vadd.f32 %v64, %v90
  %92 = vmatmul.f32.gmra.mxu0 %v71
  %v93 = vpop.f32.mrf.mxu0
  %v94 = vadd.f32 %v64, %v93
  %95 = vdwg.mxu0
  %v96 = vmax.f32 %v91, 0.0
  %v97 = vmax.f32 %v94, 0.0
  %v98 = vld [vmem:[%s1 + $0x30] sm:$0x3]
  %100 = vrot.lane.b32.xlu0 %v98, 64
  %v101 = vpop.permute.xlu0 %100
  %vm102 = vcmask 130048
  %v103 = vsel %vm102, %v101, 0
  %105 = vmatpush.msra.mxu0 0.0
  %106 = vmatpush.msra.mxu0 0.0
  %107 = vmatpush.msra.mxu0 0.0
  %108 = vmatpush.msra.mxu0 0.0
  %109 = vmatpush.msra.mxu0 0.0
  %110 = vmatpush.msra.mxu0 0.0
  %111 = vmatpush.msra.mxu0 0.0
  %112 = vmatpush.msra.mxu0 0.0
  %113 = vmatpush.msra.mxu0 0.0
  %114 = vmatpush.msra.mxu0 0.0
  %115 = vmatpush.msra.mxu0 0.0
  %116 = vmatpush.msra.mxu0 0.0
  %117 = vmatpush.msra.mxu0 0.0
  %118 = vmatpush.msra.mxu0 0.0
  %119 = vmatpush.msra.mxu0 %v97
  %120 = vmatpush.msra.mxu0 %v96
  %121 = vmatmul.f32.gmra.mxu0 %v103
  %v122 = vpop.f32.mrf.mxu0
  %v123 = vadd.f32 0.0, %v122
  %124 = vdwg.mxu0
  %v125 = vld [vmem:[%s1 + $0x20] sm:$0xff]
  %v126 = vld [vmem:[%s1 + $0x28] sm:$0xff]
  %v127 = vld [vmem:[%s1 + $0x30] sm:$0xff]
  %v128 = vld [vmem:[%s1 + $0x38] sm:$0xff]
  %v129 = vld [vmem:[%s1 + $0x8] sm:$0x1]
  %v130 = vperm.slane %v129, 0
  %132 = vrot.lane.b32.xlu0 %v130, 32
  %v133 = vpop.permute.xlu0 %132
  %v136 = vsel %vm66, %v123, 0
  %138 = vmatpush.msra.mxu0 0.0
  %139 = vmatpush.msra.mxu0 0.0
  %140 = vmatpush.msra.mxu0 0.0
  %141 = vmatpush.msra.mxu0 0.0
  %142 = vmatpush.msra.mxu0 0.0
  %143 = vmatpush.msra.mxu0 0.0
  %144 = vmatpush.msra.mxu0 0.0
  %145 = vmatpush.msra.mxu0 0.0
  %146 = vmatpush.msra.mxu0 0.0
  %147 = vmatpush.msra.mxu0 0.0
  %148 = vmatpush.msra.mxu0 0.0
  %149 = vmatpush.msra.mxu0 0.0
  %150 = vmatpush.msra.mxu0 %v128
  %151 = vmatpush.msra.mxu0 %v127
  %152 = vmatpush.msra.mxu0 %v126
  %153 = vmatpush.msra.mxu0 %v125
  %154 = vmatmul.f32.gmra.mxu0 %v136
  %v155 = vpop.f32.mrf.mxu0
  %v156 = vadd.f32 %v133, %v155
  %157 = vdwg.mxu0
  %v158 = vld [vmem:[%s0] sm:$0x3]
  %v159 = vmul.f32 %v156, 0.5
  %v160 = vmul.f32 %v159, 1.442695
  %v161 = vpow.pop %v160
  %v162 = vmul.f32 %v158, %v161
  %164 = vrot.lane.b32.xlu0 %v162, 112
  %v165 = vpop.permute.xlu0 %164
  %v167 = vadd.f32 %v156, %v165
  %v168 = vld [vmem:[%s1] sm:$0xff]
  %v169 = vld [vmem:[%s1 + $0x8] sm:$0xff]
  %172 = vrot.lane.b32.xlu0 %v168, 64
  %v173 = vpop.permute.xlu0 %172
  %174 = vrot.lane.b32.xlu0 %v169, 64
  %v175 = vpop.permute.xlu0 %174
  %v179 = vsel %vm102, %v167, 0
  %181 = vmatpush.msra.mxu0 0.0
  %182 = vmatpush.msra.mxu0 0.0
  %183 = vmatpush.msra.mxu0 0.0
  %184 = vmatpush.msra.mxu0 0.0
  %185 = vmatpush.msra.mxu0 0.0
  %186 = vmatpush.msra.mxu0 0.0
  %187 = vmatpush.msra.mxu0 0.0
  %188 = vmatpush.msra.mxu0 0.0
  %189 = vmatpush.msra.mxu0 0.0
  %190 = vmatpush.msra.mxu0 0.0
  %191 = vmatpush.msra.mxu0 0.0
  %192 = vmatpush.msra.mxu0 0.0
  %193 = vmatpush.msra.mxu0 0.0
  %194 = vmatpush.msra.mxu0 0.0
  %195 = vmatpush.msra.mxu0 %v175
  %196 = vmatpush.msra.mxu0 %v173
  %197 = vmatmul.f32.gmra.mxu0 %v179
  %v198 = vpop.f32.mrf.mxu0
  %v199 = vadd.f32 0.0, %v198
  %200 = vdwg.mxu0
  %v201 = vld [vmem:[%s1 + $0x28] sm:$0xff]
  %202 = vrot.lane.b32.xlu0 %v11, 120
  %v203 = vpop.permute.xlu0 %202
  %204 = vrot.lane.b32.xlu0 %v12, 120
  %v205 = vpop.permute.xlu0 %204
  %207 = vrot.lane.b32.xlu0 %v201, 64
  %v208 = vpop.permute.xlu0 %207
  %v210 = vsel %vm24, %v203, 0
  %v212 = vsel %vm24, %v205, 0
  %214 = vmatpush.msra.mxu0 0.0
  %215 = vmatpush.msra.mxu0 0.0
  %216 = vmatpush.msra.mxu0 0.0
  %217 = vmatpush.msra.mxu0 0.0
  %218 = vmatpush.msra.mxu0 0.0
  %219 = vmatpush.msra.mxu0 0.0
  %220 = vmatpush.msra.mxu0 0.0
  %221 = vmatpush.msra.mxu0 0.0
  %222 = vmatpush.msra.mxu0 0.0
  %223 = vmatpush.msra.mxu0 0.0
  %224 = vmatpush.msra.mxu0 0.0
  %225 = vmatpush.msra.mxu0 0.0
  %226 = vmatpush.msra.mxu0 0.0
  %227 = vmatpush.msra.mxu0 0.0
  %228 = vmatpush.msra.mxu0 0.0
  %229 = vmatpush.msra.mxu0 %v208
  %230 = vmatmul.f32.gmra.mxu0 %v210
  %v231 = vpop.f32.mrf.mxu0
  %v232 = vadd.f32 0.0, %v231
  %233 = vmatmul.f32.gmra.mxu0 %v212
  %v234 = vpop.f32.mrf.mxu0
  %v235 = vadd.f32 0.0, %v234
  %236 = vdwg.mxu0
  %239 = vrot.lane.b32.xlu0 %v58, 64
  %v240 = vpop.permute.xlu0 %239
  %241 = vrot.lane.b32.xlu0 %v59, 64
  %v242 = vpop.permute.xlu0 %241
  %vm243 = vcmask 15360
  %v244 = vsel %vm243, %v240, 0
  %v246 = vsel %vm243, %v242, 0
  %vm248 = vcmask 1041408
  %v250 = vsel %vm248, %v199, 0
  %252 = vmatpush.msra.mxu0 0.0
  %253 = vmatpush.msra.mxu0 0.0
  %254 = vmatpush.msra.mxu0 0.0
  %255 = vmatpush.msra.mxu0 0.0
  %256 = vmatpush.msra.mxu0 0.0
  %257 = vmatpush.msra.mxu0 0.0
  %258 = vmatpush.msra.mxu0 0.0
  %259 = vmatpush.msra.mxu0 0.0
  %260 = vmatpush.msra.mxu0 0.0
  %261 = vmatpush.msra.mxu0 0.0
  %262 = vmatpush.msra.mxu0 0.0
  %263 = vmatpush.msra.mxu0 0.0
  %264 = vmatpush.msra.mxu0 0.0
  %265 = vmatpush.msra.mxu0 0.0
  %266 = vmatpush.msra.mxu0 0.0
  %267 = vmatpush.msra.mxu0 %v250
  %268 = vmatmul.f32.gmra.mxu0 %v244
  %v269 = vpop.f32.mrf.mxu0
  %v270 = vadd.f32 %v232, %v269
  %271 = vmatmul.f32.gmra.mxu0 %v246
  %v272 = vpop.f32.mrf.mxu0
  %v273 = vadd.f32 %v235, %v272
  %274 = vdwg.mxu0
  %v275 = vld [vmem:[%s1 + $0x10] sm:$0x1]
  %v276 = vperm.slane %v275, 0
  %278 = vrot.lane.b32.xlu0 %v276, 32
  %v279 = vpop.permute.xlu0 %278
  %v281 = vadd.f32 %v270, %v279
  %v282 = vadd.f32 %v273, %v279
  %v283 = vmax.f32 %v281, 0.0
  %v284 = vmax.f32 %v282, 0.0
  %v285 = vld [vmem:[%s1 + $0x18] sm:$0x1]
  %v286 = vperm.slane %v285, 0
  %289 = vrot.lane.b32.xlu0 %v56, 96
  %v290 = vpop.permute.xlu0 %289
  %291 = vrot.lane.b32.xlu0 %v57, 96
  %v292 = vpop.permute.xlu0 %291
  %293 = vrot.lane.b32.xlu0 %v58, 96
  %v294 = vpop.permute.xlu0 %293
  %295 = vrot.lane.b32.xlu0 %v59, 96
  %v296 = vpop.permute.xlu0 %295
  %302 = vrot.lane.b32.xlu0 %v286, 32
  %v303 = vpop.permute.xlu0 %302
  %v306 = vsel %vm66, %v283, 0
  %v309 = vsel %vm66, %v284, 0
  %311 = vmatpush.msra.mxu0 0.0
  %312 = vmatpush.msra.mxu0 0.0
  %313 = vmatpush.msra.mxu0 0.0
  %314 = vmatpush.msra.mxu0 0.0
  %315 = vmatpush.msra.mxu0 0.0
  %316 = vmatpush.msra.mxu0 0.0
  %317 = vmatpush.msra.mxu0 0.0
  %318 = vmatpush.msra.mxu0 0.0
  %319 = vmatpush.msra.mxu0 0.0
  %320 = vmatpush.msra.mxu0 0.0
  %321 = vmatpush.msra.mxu0 0.0
  %322 = vmatpush.msra.mxu0 0.0
  %323 = vmatpush.msra.mxu0 %v296
  %324 = vmatpush.msra.mxu0 %v294
  %325 = vmatpush.msra.mxu0 %v292
  %326 = vmatpush.msra.mxu0 %v290
  %327 = vmatmul.f32.gmra.mxu0 %v306
  %v328 = vpop.f32.mrf.mxu0
  %v329 = vadd.f32 %v303, %v328
  %330 = vmatmul.f32.gmra.mxu0 %v309
  %v331 = vpop.f32.mrf.mxu0
  %v332 = vadd.f32 %v303, %v331
  %333 = vdwg.mxu0
  %v334 = vmax.f32 %v329, 0.0
  %v335 = vmax.f32 %v332, 0.0
  %v336 = vld [vmem:[%s1 + $0x20] sm:$0x1]
  %v337 = vperm.slane %v336, 0
  %342 = vrot.lane.b32.xlu0 %v125, 96
  %v343 = vpop.permute.xlu0 %342
  %344 = vrot.lane.b32.xlu0 %v126, 96
  %v345 = vpop.permute.xlu0 %344
  %346 = vrot.lane.b32.xlu0 %v127, 96
  %v347 = vpop.permute.xlu0 %346
  %348 = vrot.lane.b32.xlu0 %v128, 96
  %v349 = vpop.permute.xlu0 %348
  %355 = vrot.lane.b32.xlu0 %v337, 32
  %v356 = vpop.permute.xlu0 %355
  %v359 = vsel %vm66, %v334, 0
  %v362 = vsel %vm66, %v335, 0
  %364 = vmatpush.msra.mxu0 0.0
  %365 = vmatpush.msra.mxu0 0.0
  %366 = vmatpush.msra.mxu0 0.0
  %367 = vmatpush.msra.mxu0 0.0
  %368 = vmatpush.msra.mxu0 0.0
  %369 = vmatpush.msra.mxu0 0.0
  %370 = vmatpush.msra.mxu0 0.0
  %371 = vmatpush.msra.mxu0 0.0
  %372 = vmatpush.msra.mxu0 0.0
  %373 = vmatpush.msra.mxu0 0.0
  %374 = vmatpush.msra.mxu0 0.0
  %375 = vmatpush.msra.mxu0 0.0
  %376 = vmatpush.msra.mxu0 %v349
  %377 = vmatpush.msra.mxu0 %v347
  %378 = vmatpush.msra.mxu0 %v345
  %379 = vmatpush.msra.mxu0 %v343
  %380 = vmatmul.f32.gmra.mxu0 %v359
  %v381 = vpop.f32.mrf.mxu0
  %v382 = vadd.f32 %v356, %v381
  %383 = vmatmul.f32.gmra.mxu0 %v362
  %v384 = vpop.f32.mrf.mxu0
  %v385 = vadd.f32 %v356, %v384
  %386 = vdwg.mxu0
  %387 = vst.msk [vmem:[%s2] sm:$0xff] %vm66, %v382
  %388 = vst.msk [vmem:[%s2 + $0x8] sm:$0xff] %vm66, %v385
  %vm389 = vcmask 254976
  %390 = vst.msk [vmem:[%s2 + $0x10] sm:$0x3] %vm389, %v156
  // Predicated region
  $region10: #{ogpnp_forward.1} parent=0 // pred_check
    _
  $region11: #{ogpnp_forward.1} parent=0 // pred_check_branch
    %392 = sbr.rel (0) target = $region13
  $region12: #{ogpnp_forward.1} parent=0 // pred_region
    _
  $region13: #{ogpnp_forward.1} parent=0 // pred_fallthru
    _
  // Predicated region
  $region14: #{ogpnp_forward.1} parent=0 // pred_check
    _
  $region15: #{ogpnp_forward.1} parent=0 // pred_check_branch
    %394 = sbr.rel (0) target = $region17
  $region16: #{ogpnp_forward.1} parent=0 // pred_region
    _
  $region17: #{ogpnp_forward.1} parent=0 // pred_fallthru
    _

</llo_original>
